<compile_context>
chip_gen: v5e
topology: v5e:2x2
jax: 0.10.0
libtpu: 0.0.40
codegen_flags: <defaults>
</compile_context>

<pallas_src>
import jax
import jax.numpy as jnp
from jax.experimental import pallas as pl
from jax.experimental.pallas import tpu as pltpu

NEG_SLOPE = 0.15
_CHUNK = 512          # lane sub-block kept live in vregs through the whole layer chain


def _round_up(x, m):
    return -(-x // m) * m


# ---------------------------------------------------------------------------
# Kernel
# ---------------------------------------------------------------------------
def _make_mlp_kernel(n_layers, neg_slope, n_chunks, chunk):
    def kernel(x_ref, *refs):
        # refs = (w0_bf16, b0_f32, ..., w_{L-1}_bf16, b_{L-1}_f32, out)
        out_ref = refs[-1]
        params = refs[:-1]
        # Weights/biases are tiny (KiB): read once per grid step.
        ws = [params[2 * i][...] for i in range(n_layers)]       # bf16 (d_out, d_in)
        bs = [params[2 * i + 1][...] for i in range(n_layers)]   # f32  (d_out, 1)

        def apply_layers(h_bf16):
            h = h_bf16
            for li in range(n_layers):
                # bf16 x bf16 operands, f32 accumulation on the MXU.
                h = jnp.dot(ws[li], h, preferred_element_type=jnp.float32) + bs[li]
                if li < n_layers - 1:
                    # LeakyReLU (0 < slope < 1): mul + max only.
                    h = jnp.maximum(h, neg_slope * h)
                    h = h.astype(jnp.bfloat16)
            return h                                             # f32 (d_out, chunk)

        if n_chunks == 1:
            out_ref[...] = apply_layers(x_ref[...].astype(jnp.bfloat16)).astype(out_ref.dtype)
        else:
            def body(c, carry):
                start = pl.multiple_of(c * chunk, chunk)
                h = x_ref[:, pl.ds(start, chunk)].astype(jnp.bfloat16)
                out_ref[:, pl.ds(start, chunk)] = apply_layers(h).astype(out_ref.dtype)
                return carry

            jax.lax.fori_loop(0, n_chunks, body, 0)

    return kernel


# ---------------------------------------------------------------------------
# Wrapper
# ---------------------------------------------------------------------------
def _choose_lane_tile(S, target, batch):
    """Lane tile: multiple of _CHUNK (hence of 128), capped at S-chunk granularity."""
    if S <= _CHUNK:
        return S                                  # block == full lane dim (always legal)
    target = max(int(target), _CHUNK)
    tile = min((target // _CHUNK) * _CHUNK, (S // _CHUNK) * _CHUNK)
    # Keep >= 2 grid steps when batch == 1 so v7x megacore can shard.
    if batch == 1 and tile >= S:
        tile = max(_CHUNK, _round_up(S // 2, _CHUNK))
    return tile


def mlp_apply(x3, weights_t, biases, *, lane_tile=16384):
    """x3: (B, D_in, S) float32, channels-first.

    weights_t[i]: (d_out_i, d_in_i)  (PyTorch nn.Linear weight layout), float32
    biases[i]:    (d_out_i, 1), float32
    Returns (B, D_out, S) float32.
    """
    n_layers = len(weights_t)
    B, D_in, S = x3.shape
    D_out = weights_t[-1].shape[0]

    tile_l = _choose_lane_tile(S, lane_tile, B)
    grid = (B, pl.cdiv(S, tile_l))
    if tile_l <= _CHUNK:
        n_chunks, chunk = 1, tile_l
    else:
        n_chunks, chunk = tile_l // _CHUNK, _CHUNK

    kernel = _make_mlp_kernel(n_layers, NEG_SLOPE, n_chunks, chunk)

    # bf16 matmul operands (cast once here, not per grid step); biases stay f32.
    weights_bf16 = [w.astype(jnp.bfloat16) for w in weights_t]

    in_specs = [pl.BlockSpec((None, D_in, tile_l), lambda b, j: (b, 0, j))]
    params = []
    for wt, bias in zip(weights_bf16, biases):
        # Constant block index -> fetched once, not re-DMA'd every step.
        in_specs.append(pl.BlockSpec(wt.shape, lambda b, j: (0, 0)))
        in_specs.append(pl.BlockSpec(bias.shape, lambda b, j: (0, 0)))
        params.extend([wt, bias])

    flops = 2 * B * S * sum(int(w.shape[0]) * int(w.shape[1]) for w in weights_t)
    bytes_accessed = (4 * B * S * (D_in + D_out)
                      + sum(2 * int(w.size) for w in weights_bf16)
                      + sum(4 * int(b.size) for b in biases))

    out = pl.pallas_call(
        kernel,
        out_shape=jax.ShapeDtypeStruct((B, D_out, S), jnp.float32),
        grid_spec=pltpu.PrefetchScalarGridSpec(
            num_scalar_prefetch=0,
            grid=grid,
            in_specs=in_specs,
            out_specs=pl.BlockSpec((None, D_out, tile_l), lambda b, j: (b, 0, j)),
        ),
        compiler_params=pltpu.CompilerParams(
            dimension_semantics=("parallel", "parallel"),
            vmem_limit_bytes=48 * 1024 * 1024,   # headroom under v7x's 64 MiB VMEM
        ),
        cost_estimate=pl.CostEstimate(
            flops=flops, transcendentals=0, bytes_accessed=bytes_accessed),
    )(x3, *params)
    return out


def mlp_forward(x, weights_t, biases, *, lane_tile=16384):
    """Mirrors MLP.forward: 5-D (B,P,L,H,W) or 4-D (B,P,H,W); channels = MLP features."""
    d_out = weights_t[-1].shape[0]
    if x.ndim == 5:
        B, P, L, H, W = x.shape
        if d_out != P * L:
            raise ValueError(f"5-D path requires output_size == P*L ({P*L}), got {d_out}")
        xr = x.reshape(B, P * L, H * W)                 # pure view, no transpose
        y = mlp_apply(xr, weights_t, biases, lane_tile=lane_tile)
        return y.reshape(B, P, L, H, W)
    elif x.ndim == 4:
        B, P, H, W = x.shape
        xr = x.reshape(B, P, H * W)
        y = mlp_apply(xr, weights_t, biases, lane_tile=lane_tile)
        return y.reshape(B, d_out, H, W)
    else:
        raise ValueError(f"expected 4-D or 5-D input, got ndim={x.ndim}")


# ---------------------------------------------------------------------------
# Parameter init (mimics torch.nn.Linear U(-1/sqrt(fan_in), +1/sqrt(fan_in)))
# ---------------------------------------------------------------------------
def init_mlp_params(key, input_size, hidden_sizes, output_size):
    weights_t, biases = [], []
    dims = [input_size] + list(hidden_sizes) + [output_size]
    for d_in, d_out in zip(dims[:-1], dims[1:]):
        key, kw, kb = jax.random.split(key, 3)
        bound = 1.0 / float(d_in) ** 0.5
        weights_t.append(jax.random.uniform(kw, (d_out, d_in), jnp.float32, -bound, bound))
        biases.append(jax.random.uniform(kb, (d_out, 1), jnp.float32, -bound, bound))
    return weights_t, biases


# ---------------------------------------------------------------------------
# Pure-JAX (f32) reference replicating the PyTorch permute-based forward exactly
# ---------------------------------------------------------------------------
def _ref_channels_last(x_cl, weights_t, biases):
    h = x_cl
    for i, (wt, b) in enumerate(zip(weights_t, biases)):
        h = h @ wt.T + b[:, 0]
        if i < len(weights_t) - 1:
            h = jnp.where(h > 0, h, NEG_SLOPE * h)
    return h


def torch_style_reference(x, weights_t, biases):
    if x.ndim == 5:
        B, P, L, H, W = x.shape
        xt = jnp.transpose(x, (0, 3, 4, 1, 2)).reshape(B, H, W, P * L)
        h = _ref_channels_last(xt, weights_t, biases)
        h = jnp.transpose(h, (0, 3, 1, 2))
        return h.reshape(B, P, L, H, W)
    B, P, H, W = x.shape
    xt = jnp.transpose(x, (0, 2, 3, 1))
    h = _ref_channels_last(xt, weights_t, biases)
    return jnp.transpose(h, (0, 3, 1, 2))


# ---------------------------------------------------------------------------
if __name__ == "__main__":
    key = jax.random.PRNGKey(0)
    # bf16 matmul operands vs f32 reference -> loosened tolerance (expected, not a bug).
    TOL = dict(atol=5e-2, rtol=5e-2)

    # ---- 5-D path: (B, P, L, H, W); MLP maps P*L -> 32 -> 32 -> P*L ----
    B, P, L, H, W = 2, 4, 2, 8, 8
    key, kx5, kp5 = jax.random.split(key, 3)
    x5 = jax.random.normal(kx5, (B, P, L, H, W), jnp.float32)
    w5, b5 = init_mlp_params(kp5, P * L, [32, 32], P * L)
    y5 = jax.block_until_ready(mlp_forward(x5, w5, b5))
    assert y5.shape == (B, P, L, H, W)
    assert jnp.allclose(y5, torch_style_reference(x5, w5, b5), **TOL)

    # ---- 4-D path: (B, P, H, W); MLP maps P -> 32 -> 32 -> P ----
    B4, P4, H4, W4 = 2, 4, 16, 16
    key, kx4, kp4 = jax.random.split(key, 3)
    x4 = jax.random.normal(kx4, (B4, P4, H4, W4), jnp.float32)
    w4, b4 = init_mlp_params(kp4, P4, [32, 32], P4)
    y4 = jax.block_until_ready(mlp_forward(x4, w4, b4))
    assert y4.shape == (B4, P4, H4, W4)
    assert jnp.allclose(y4, torch_style_reference(x4, w4, b4), **TOL)

    # ---- 4-D path exercising the inner chunk loop + masked partial last block ----
    Bc, Pc, Hc, Wc = 2, 4, 40, 40            # S = 1600: tile=1536, 3 chunks, partial tail
    key, kxc, kpc = jax.random.split(key, 3)
    xc = jax.random.normal(kxc, (Bc, Pc, Hc, Wc), jnp.float32)
    wc, bc = init_mlp_params(kpc, Pc, [32, 32], Pc)
    yc = jax.block_until_ready(mlp_forward(xc, wc, bc))
    assert yc.shape == (Bc, Pc, Hc, Wc)
    assert jnp.allclose(yc, torch_style_reference(xc, wc, bc), **TOL)

    print("KERNEL_OK")
</pallas_src>

<mosaic_0001>
module attributes {stable_mosaic.version = 11 : i64} {
  func.func @kernel(%arg0: i32, %arg1: i32, %arg2: memref<1x8x64xf32, #tpu.memory_space<vmem>>, %arg3: memref<32x8xbf16, #tpu.memory_space<vmem>>, %arg4: memref<32x1xf32, #tpu.memory_space<vmem>>, %arg5: memref<32x32xbf16, #tpu.memory_space<vmem>>, %arg6: memref<32x1xf32, #tpu.memory_space<vmem>>, %arg7: memref<8x32xbf16, #tpu.memory_space<vmem>>, %arg8: memref<8x1xf32, #tpu.memory_space<vmem>>, %arg9: memref<1x8x64xf32, #tpu.memory_space<vmem>>) attributes {dimension_semantics = [#tpu.dimension_semantics<parallel>, #tpu.dimension_semantics<parallel>], iteration_bounds = array<i64: 2, 1>, scalar_prefetch = 0 : i64, scratch_operands = 0 : i64, tpu.core_type = #tpu.core_type<tc>, window_params = [{transform_indices = @transform_0, window_bounds = array<i64: 1, 8, 64>}, {pipeline_mode = #tpu.pipeline_mode<synchronous>, transform_indices = @transform_1, window_bounds = array<i64: 32, 8>}, {pipeline_mode = #tpu.pipeline_mode<synchronous>, transform_indices = @transform_2, window_bounds = array<i64: 32, 1>}, {pipeline_mode = #tpu.pipeline_mode<synchronous>, transform_indices = @transform_3, window_bounds = array<i64: 32, 32>}, {pipeline_mode = #tpu.pipeline_mode<synchronous>, transform_indices = @transform_4, window_bounds = array<i64: 32, 1>}, {pipeline_mode = #tpu.pipeline_mode<synchronous>, transform_indices = @transform_5, window_bounds = array<i64: 8, 32>}, {pipeline_mode = #tpu.pipeline_mode<synchronous>, transform_indices = @transform_6, window_bounds = array<i64: 8, 1>}, {transform_indices = @transform_7, window_bounds = array<i64: 1, 8, 64>}]} {
    %c0 = arith.constant 0 : index
    %c0_0 = arith.constant 0 : index
    %0 = vector.load %arg3[%c0, %c0_0] : memref<32x8xbf16, #tpu.memory_space<vmem>>, vector<32x8xbf16>
    %c0_1 = arith.constant 0 : index
    %c0_2 = arith.constant 0 : index
    %1 = vector.load %arg5[%c0_1, %c0_2] : memref<32x32xbf16, #tpu.memory_space<vmem>>, vector<32x32xbf16>
    %c0_3 = arith.constant 0 : index
    %c0_4 = arith.constant 0 : index
    %2 = vector.load %arg7[%c0_3, %c0_4] : memref<8x32xbf16, #tpu.memory_space<vmem>>, vector<8x32xbf16>
    %c0_5 = arith.constant 0 : index
    %c0_6 = arith.constant 0 : index
    %3 = vector.load %arg4[%c0_5, %c0_6] : memref<32x1xf32, #tpu.memory_space<vmem>>, vector<32x1xf32>
    %c0_7 = arith.constant 0 : index
    %c0_8 = arith.constant 0 : index
    %4 = vector.load %arg6[%c0_7, %c0_8] : memref<32x1xf32, #tpu.memory_space<vmem>>, vector<32x1xf32>
    %c0_9 = arith.constant 0 : index
    %c0_10 = arith.constant 0 : index
    %5 = vector.load %arg8[%c0_9, %c0_10] : memref<8x1xf32, #tpu.memory_space<vmem>>, vector<8x1xf32>
    %c0_11 = arith.constant 0 : index
    %c0_12 = arith.constant 0 : index
    %c0_13 = arith.constant 0 : index
    %6 = vector.load %arg2[%c0_11, %c0_12, %c0_13] : memref<1x8x64xf32, #tpu.memory_space<vmem>>, vector<1x8x64xf32>
    %7 = vector.shape_cast %6 : vector<1x8x64xf32> to vector<8x64xf32>
    %8 = arith.truncf %7 : vector<8x64xf32> to vector<8x64xbf16>
    %cst = arith.constant dense<0.000000e+00> : vector<32x64xf32>
    %9 = tpu.matmul %0, %8, %cst {dimension_numbers = #tpu.dot_dimension_numbers<[1], [0], [0], [1], [0, 0, 1, 1], [], []>} : vector<32x8xbf16>, vector<8x64xbf16>, vector<32x64xf32> -> vector<32x64xf32>
    %10 = vector.broadcast %3 : vector<32x1xf32> to vector<32x64xf32>
    %11 = arith.addf %9, %10 : vector<32x64xf32>
    %cst_14 = arith.constant 1.500000e-01 : f32
    %12 = vector.broadcast %cst_14 : f32 to vector<32x64xf32>
    %13 = arith.mulf %12, %11 : vector<32x64xf32>
    %14 = arith.maximumf %11, %13 : vector<32x64xf32>
    %15 = arith.truncf %14 : vector<32x64xf32> to vector<32x64xbf16>
    %cst_15 = arith.constant dense<0.000000e+00> : vector<32x64xf32>
    %16 = tpu.matmul %1, %15, %cst_15 {dimension_numbers = #tpu.dot_dimension_numbers<[1], [0], [0], [1], [0, 0, 1, 1], [], []>} : vector<32x32xbf16>, vector<32x64xbf16>, vector<32x64xf32> -> vector<32x64xf32>
    %17 = vector.broadcast %4 : vector<32x1xf32> to vector<32x64xf32>
    %18 = arith.addf %16, %17 : vector<32x64xf32>
    %cst_16 = arith.constant 1.500000e-01 : f32
    %19 = vector.broadcast %cst_16 : f32 to vector<32x64xf32>
    %20 = arith.mulf %19, %18 : vector<32x64xf32>
    %21 = arith.maximumf %18, %20 : vector<32x64xf32>
    %22 = arith.truncf %21 : vector<32x64xf32> to vector<32x64xbf16>
    %cst_17 = arith.constant dense<0.000000e+00> : vector<8x64xf32>
    %23 = tpu.matmul %2, %22, %cst_17 {dimension_numbers = #tpu.dot_dimension_numbers<[1], [0], [0], [1], [0, 0, 1, 1], [], []>} : vector<8x32xbf16>, vector<32x64xbf16>, vector<8x64xf32> -> vector<8x64xf32>
    %24 = vector.broadcast %5 : vector<8x1xf32> to vector<8x64xf32>
    %25 = arith.addf %23, %24 : vector<8x64xf32>
    %c0_18 = arith.constant 0 : index
    %c0_19 = arith.constant 0 : index
    %c0_20 = arith.constant 0 : index
    %26 = vector.load %arg9[%c0_18, %c0_19, %c0_20] : memref<1x8x64xf32, #tpu.memory_space<vmem>>, vector<1x8x64xf32>
    %27 = vector.shape_cast %26 : vector<1x8x64xf32> to vector<8x64xf32>
    %28 = vector.shape_cast %25 : vector<8x64xf32> to vector<1x8x64xf32>
    tpu.vector_store %arg9[%c0_18, %c0_19, %c0_20], %28 {strides = array<i32>} : memref<1x8x64xf32, #tpu.memory_space<vmem>>, vector<1x8x64xf32>,
    return
  }
  func.func @transform_0(%arg0: i32, %arg1: i32) -> (i32, i32, i32) {
    %c0_i32 = arith.constant 0 : i32
    %c0_i32_0 = arith.constant 0 : i32
    return %arg0, %c0_i32, %arg1 : i32, i32, i32
  }
  func.func @transform_1(%arg0: i32, %arg1: i32) -> (i32, i32) {
    %c0_i32 = arith.constant 0 : i32
    %c0_i32_0 = arith.constant 0 : i32
    %c0_i32_1 = arith.constant 0 : i32
    return %c0_i32, %c0_i32_0 : i32, i32
  }
  func.func @transform_2(%arg0: i32, %arg1: i32) -> (i32, i32) {
    %c0_i32 = arith.constant 0 : i32
    %c0_i32_0 = arith.constant 0 : i32
    %c0_i32_1 = arith.constant 0 : i32
    return %c0_i32, %c0_i32_0 : i32, i32
  }
  func.func @transform_3(%arg0: i32, %arg1: i32) -> (i32, i32) {
    %c0_i32 = arith.constant 0 : i32
    %c0_i32_0 = arith.constant 0 : i32
    %c0_i32_1 = arith.constant 0 : i32
    return %c0_i32, %c0_i32_0 : i32, i32
  }
  func.func @transform_4(%arg0: i32, %arg1: i32) -> (i32, i32) {
    %c0_i32 = arith.constant 0 : i32
    %c0_i32_0 = arith.constant 0 : i32
    %c0_i32_1 = arith.constant 0 : i32
    return %c0_i32, %c0_i32_0 : i32, i32
  }
  func.func @transform_5(%arg0: i32, %arg1: i32) -> (i32, i32) {
    %c0_i32 = arith.constant 0 : i32
    %c0_i32_0 = arith.constant 0 : i32
    %c0_i32_1 = arith.constant 0 : i32
    return %c0_i32, %c0_i32_0 : i32, i32
  }
  func.func @transform_6(%arg0: i32, %arg1: i32) -> (i32, i32) {
    %c0_i32 = arith.constant 0 : i32
    %c0_i32_0 = arith.constant 0 : i32
    %c0_i32_1 = arith.constant 0 : i32
    return %c0_i32, %c0_i32_0 : i32, i32
  }
  func.func @transform_7(%arg0: i32, %arg1: i32) -> (i32, i32, i32) {
    %c0_i32 = arith.constant 0 : i32
    %c0_i32_0 = arith.constant 0 : i32
    return %arg0, %c0_i32, %arg1 : i32, i32, i32
  }
}

</mosaic_0001>

<llo_original>
// kernel: tpu_custom_call.1
$region0: #{tpu_custom_call.1}
  #allocation0 [shape = 'u32[]', space=smem, size = 0x4, offset = 0x4, fixed_abs, tag = 'smem constant byte address 0x4 - core index']
  #allocation1 [shape = 'u32[72,128]{1,0:T(1,128)}', space=vmem, size = 0x9000, scoped, tag = 'internal scratch']
  %s0 = inlined_call_operand.vmem [shape: f32[2,8,64], index: 0, kind: input, shape index: {}]
  %s1 = inlined_call_operand.vmem [shape: bf16[32,8], index: 1, kind: input, shape index: {}]
  %s2 = inlined_call_operand.vmem [shape: f32[32,1], index: 2, kind: input, shape index: {}]
  %s3 = inlined_call_operand.vmem [shape: bf16[32,32], index: 3, kind: input, shape index: {}]
  %s4 = inlined_call_operand.vmem [shape: f32[32,1], index: 4, kind: input, shape index: {}]
  %s5 = inlined_call_operand.vmem [shape: bf16[8,32], index: 5, kind: input, shape index: {}]
  %s6 = inlined_call_operand.vmem [shape: f32[8,1], index: 6, kind: input, shape index: {}]
  %s7 = inlined_call_operand.hbm [shape: f32[2,8,64], index: 7, kind: output, shape index: {}]
  %s8 = sld [smem:[#allocation0]]
  $region61: #{tpu_custom_call.1} parent=0
    _
  %s10 = ssub.s32 1, %s8
  %s11 = scalar_select 0, %s10, %s8
  $region1: #{tpu_custom_call.1} parent=0
    #allocation2 [shape = 'u8[8192]{0}', space=vmem, size = 0x2000, scoped, tag = 'output window, operand 0']
    #allocation3 [shape = 's32[2]{0}', space=sflag, size = 0x8, scoped, tag = 'scoped memory for tpu_custom_call.1']
    %12 = vsyncpa [#allocation3], 0
    %s13 = scalar_lea.sflag [#allocation3], 1
    %14 = vsyncpa %s13, 0
    loop: start=0, step=1, limit=4
    $region2: #{tpu_custom_call.1} parent=1 // loop_pre_header
      _
    $region3: #{tpu_custom_call.1} parent=1 // loop_header
      %s16 = sphi 0, %s20
      %p17 = scmp.ge.s32.totalorder %s16, 4
      %s23 = sphi 0, %s35
      %s24 = sphi 0, %s31
      %s25 = sphi 0, %s23
      %s26 = sphi 0, %s24
      %s27 = sphi 0, %s25
      %s28 = sphi 0, %s26
      %s40 = sphi 0, %s42
      %s43 = sphi 0, %s40
      %s44 = sphi 0, %s43
      %s60 = sphi 0, %s44
      %s64 = sphi 0, %s64
      %s66 = sphi 0, %s64
      %s67 = sphi 0, %s66
      %s81 = sphi 0, %s67
      %s85 = sphi 0, %s85
      %s87 = sphi 0, %s85
      %s88 = sphi 0, %s87
      %s102 = sphi 0, %s88
      %s106 = sphi 0, %s106
      %s108 = sphi 0, %s106
      %s109 = sphi 0, %s108
      %s123 = sphi 0, %s109
      %s127 = sphi 0, %s127
      %s129 = sphi 0, %s127
      %s130 = sphi 0, %s129
      %s144 = sphi 0, %s130
      %s148 = sphi 0, %s148
      %s150 = sphi 0, %s148
      %s151 = sphi 0, %s150
      %s165 = sphi 0, %s151
      %s169 = sphi 0, %s169
      %s171 = sphi 0, %s169
      %s172 = sphi 0, %s171
      %s186 = sphi 0, %s172
      %s194 = sphi 0, %s196
      %s197 = sphi 0, %s194
      %s198 = sphi 0, %s197
      %s214 = sphi 0, %s198
    $region4: #{tpu_custom_call.1} parent=1 // loop_header_branch
      %19 = sbr.rel (%p17) target = $region8
    $region5: #{tpu_custom_call.1} parent=1 // loop_body
      %s21 = ssub.s32 %s16, 1
      %s22 = ssub.s32 %s16, 2
      %s29 = sadd.s32 1, %s24
      %p30 = scmp.ge.s32.totalorder %s29, 1
      %s31 = scalar_select %p30, 0, %s29
      %s32 = sadd.s32 1, %s23
      %s33 = scalar_select %p30, %s32, %s23
      %p34 = scmp.ge.s32.totalorder %s33, 2
      %s35 = scalar_select %p34, 0, %s33
      %s36 = ssub.s32 %s23, %s35
      %s37 = ssub.s32 %s24, %s31
      %s38 = sor.u32 %s36, %s37
      %p39 = scmp.eq.s32.totalorder %s38, 0
      %s41 = sadd.s32 %s40, 1
      %s42 = scalar_select %p39, %s40, %s41
      %p45 = pneg %p39
      %p46 = scmp.eq.s32.totalorder %s16, 1
      %p47 = por %p45, %p46
      %p48 = scmp.ne.s32.totalorder %s40, %s43
      %p49 = scmp.eq.s32.totalorder %s16, 0
      %p50 = por %p48, %p49
      %p51 = scmp.ne.s32.totalorder %s40, %s43
      %p52 = scmp.eq.s32.totalorder %s21, 1
      %p53 = por %p51, %p52
      %p54 = scmp.ne.s32.totalorder %s43, %s44
      %p55 = scmp.eq.s32.totalorder %s21, 0
      %p56 = por %p54, %p55
      %p57 = scmp.ne.s32.totalorder %s43, %s44
      %p58 = scmp.eq.s32.totalorder %s22, 1
      %p59 = por %p57, %p58
      %p61 = scmp.ne.s32.totalorder %s44, %s60
      %p62 = scmp.eq.s32.totalorder %s22, 0
      %p63 = por %p61, %p62
      %s65 = sadd.s32 %s64, 1
      %p68 = scmp.eq.s32.totalorder %s16, 1
      %p69 = scmp.ne.s32.totalorder %s64, %s66
      %p70 = scmp.eq.s32.totalorder %s16, 0
      %p71 = por %p69, %p70
      %p72 = scmp.ne.s32.totalorder %s64, %s66
      %p73 = scmp.eq.s32.totalorder %s21, 1
      %p74 = por %p72, %p73
      %p75 = scmp.ne.s32.totalorder %s66, %s67
      %p76 = scmp.eq.s32.totalorder %s21, 0
      %p77 = por %p75, %p76
      %p78 = scmp.ne.s32.totalorder %s66, %s67
      %p79 = scmp.eq.s32.totalorder %s22, 1
      %p80 = por %p78, %p79
      %p82 = scmp.ne.s32.totalorder %s67, %s81
      %p83 = scmp.eq.s32.totalorder %s22, 0
      %p84 = por %p82, %p83
      %s86 = sadd.s32 %s85, 1
      %p89 = scmp.eq.s32.totalorder %s16, 1
      %p90 = scmp.ne.s32.totalorder %s85, %s87
      %p91 = scmp.eq.s32.totalorder %s16, 0
      %p92 = por %p90, %p91
      %p93 = scmp.ne.s32.totalorder %s85, %s87
      %p94 = scmp.eq.s32.totalorder %s21, 1
      %p95 = por %p93, %p94
      %p96 = scmp.ne.s32.totalorder %s87, %s88
      %p97 = scmp.eq.s32.totalorder %s21, 0
      %p98 = por %p96, %p97
      %p99 = scmp.ne.s32.totalorder %s87, %s88
      %p100 = scmp.eq.s32.totalorder %s22, 1
      %p101 = por %p99, %p100
      %p103 = scmp.ne.s32.totalorder %s88, %s102
      %p104 = scmp.eq.s32.totalorder %s22, 0
      %p105 = por %p103, %p104
      %s107 = sadd.s32 %s106, 1
      %p110 = scmp.eq.s32.totalorder %s16, 1
      %p111 = scmp.ne.s32.totalorder %s106, %s108
      %p112 = scmp.eq.s32.totalorder %s16, 0
      %p113 = por %p111, %p112
      %p114 = scmp.ne.s32.totalorder %s106, %s108
      %p115 = scmp.eq.s32.totalorder %s21, 1
      %p116 = por %p114, %p115
      %p117 = scmp.ne.s32.totalorder %s108, %s109
      %p118 = scmp.eq.s32.totalorder %s21, 0
      %p119 = por %p117, %p118
      %p120 = scmp.ne.s32.totalorder %s108, %s109
      %p121 = scmp.eq.s32.totalorder %s22, 1
      %p122 = por %p120, %p121
      %p124 = scmp.ne.s32.totalorder %s109, %s123
      %p125 = scmp.eq.s32.totalorder %s22, 0
      %p126 = por %p124, %p125
      %s128 = sadd.s32 %s127, 1
      %p131 = scmp.eq.s32.totalorder %s16, 1
      %p132 = scmp.ne.s32.totalorder %s127, %s129
      %p133 = scmp.eq.s32.totalorder %s16, 0
      %p134 = por %p132, %p133
      %p135 = scmp.ne.s32.totalorder %s127, %s129
      %p136 = scmp.eq.s32.totalorder %s21, 1
      %p137 = por %p135, %p136
      %p138 = scmp.ne.s32.totalorder %s129, %s130
      %p139 = scmp.eq.s32.totalorder %s21, 0
      %p140 = por %p138, %p139
      %p141 = scmp.ne.s32.totalorder %s129, %s130
      %p142 = scmp.eq.s32.totalorder %s22, 1
      %p143 = por %p141, %p142
      %p145 = scmp.ne.s32.totalorder %s130, %s144
      %p146 = scmp.eq.s32.totalorder %s22, 0
      %p147 = por %p145, %p146
      %s149 = sadd.s32 %s148, 1
      %p152 = scmp.eq.s32.totalorder %s16, 1
      %p153 = scmp.ne.s32.totalorder %s148, %s150
      %p154 = scmp.eq.s32.totalorder %s16, 0
      %p155 = por %p153, %p154
      %p156 = scmp.ne.s32.totalorder %s148, %s150
      %p157 = scmp.eq.s32.totalorder %s21, 1
      %p158 = por %p156, %p157
      %p159 = scmp.ne.s32.totalorder %s150, %s151
      %p160 = scmp.eq.s32.totalorder %s21, 0
      %p161 = por %p159, %p160
      %p162 = scmp.ne.s32.totalorder %s150, %s151
      %p163 = scmp.eq.s32.totalorder %s22, 1
      %p164 = por %p162, %p163
      %p166 = scmp.ne.s32.totalorder %s151, %s165
      %p167 = scmp.eq.s32.totalorder %s22, 0
      %p168 = por %p166, %p167
      %s170 = sadd.s32 %s169, 1
      %p173 = scmp.eq.s32.totalorder %s16, 1
      %p174 = scmp.ne.s32.totalorder %s169, %s171
      %p175 = scmp.eq.s32.totalorder %s16, 0
      %p176 = por %p174, %p175
      %p177 = scmp.ne.s32.totalorder %s169, %s171
      %p178 = scmp.eq.s32.totalorder %s21, 1
      %p179 = por %p177, %p178
      %p180 = scmp.ne.s32.totalorder %s171, %s172
      %p181 = scmp.eq.s32.totalorder %s21, 0
      %p182 = por %p180, %p181
      %p183 = scmp.ne.s32.totalorder %s171, %s172
      %p184 = scmp.eq.s32.totalorder %s22, 1
      %p185 = por %p183, %p184
      %p187 = scmp.ne.s32.totalorder %s172, %s186
      %p188 = scmp.eq.s32.totalorder %s22, 0
      %p189 = por %p187, %p188
      %s190 = ssub.s32 %s23, %s35
      %s191 = ssub.s32 %s24, %s31
      %s192 = sor.u32 %s190, %s191
      %p193 = scmp.eq.s32.totalorder %s192, 0
      %s195 = sadd.s32 %s194, 1
      %s196 = scalar_select %p193, %s194, %s195
      %p199 = pneg %p193
      %p200 = scmp.eq.s32.totalorder %s16, 1
      %p201 = por %p199, %p200
      %p202 = scmp.ne.s32.totalorder %s194, %s197
      %p203 = scmp.eq.s32.totalorder %s16, 0
      %p204 = por %p202, %p203
      %p205 = scmp.ne.s32.totalorder %s194, %s197
      %p206 = scmp.eq.s32.totalorder %s21, 1
      %p207 = por %p205, %p206
      %p208 = scmp.ne.s32.totalorder %s197, %s198
      %p209 = scmp.eq.s32.totalorder %s21, 0
      %p210 = por %p208, %p209
      %p211 = scmp.ne.s32.totalorder %s197, %s198
      %p212 = scmp.eq.s32.totalorder %s22, 1
      %p213 = por %p211, %p212
      %p215 = scmp.ne.s32.totalorder %s198, %s214
      %p216 = scmp.eq.s32.totalorder %s22, 0
      %p217 = por %p215, %p216
      %p218 = scmp.le.s32.totalorder 1, %s16
      %p219 = scmp.lt.s32.totalorder %s16, 3
      %p220 = pnand %p218, %p219
      %p221 = pneg %p220
      // Predicated region
      $region9: #{tpu_custom_call.1} parent=5 // pred_check
        _
      $region10: #{tpu_custom_call.1} parent=5 // pred_check_branch
        %223 = sbr.rel (%p220) target = $region12
      $region11: #{tpu_custom_call.1} parent=5 // pred_region
        %s224 = ssub.s32 %s16, 1
        // Predicated region
        $region13: #{tpu_custom_call.1} parent=11 // pred_check
          %p225 = pneg %p77
        $region14: #{tpu_custom_call.1} parent=11 // pred_check_branch
          %227 = sbr.rel (%p225) target = $region16
        $region15: #{tpu_custom_call.1} parent=11 // pred_region
          _
        $region16: #{tpu_custom_call.1} parent=11 // pred_fallthru
          _
        // Predicated region
        $region17: #{tpu_custom_call.1} parent=11 // pred_check
          %p228 = pneg %p98
        $region18: #{tpu_custom_call.1} parent=11 // pred_check_branch
          %230 = sbr.rel (%p228) target = $region20
        $region19: #{tpu_custom_call.1} parent=11 // pred_region
          _
        $region20: #{tpu_custom_call.1} parent=11 // pred_fallthru
          _
        // Predicated region
        $region21: #{tpu_custom_call.1} parent=11 // pred_check
          %p231 = pneg %p119
        $region22: #{tpu_custom_call.1} parent=11 // pred_check_branch
          %233 = sbr.rel (%p231) target = $region24
        $region23: #{tpu_custom_call.1} parent=11 // pred_region
          _
        $region24: #{tpu_custom_call.1} parent=11 // pred_fallthru
          _
        // Predicated region
        $region25: #{tpu_custom_call.1} parent=11 // pred_check
          %p234 = pneg %p140
        $region26: #{tpu_custom_call.1} parent=11 // pred_check_branch
          %236 = sbr.rel (%p234) target = $region28
        $region27: #{tpu_custom_call.1} parent=11 // pred_region
          _
        $region28: #{tpu_custom_call.1} parent=11 // pred_fallthru
          _
        // Predicated region
        $region29: #{tpu_custom_call.1} parent=11 // pred_check
          %p237 = pneg %p161
        $region30: #{tpu_custom_call.1} parent=11 // pred_check_branch
          %239 = sbr.rel (%p237) target = $region32
        $region31: #{tpu_custom_call.1} parent=11 // pred_region
          _
        $region32: #{tpu_custom_call.1} parent=11 // pred_fallthru
          _
        // Predicated region
        $region33: #{tpu_custom_call.1} parent=11 // pred_check
          %p240 = pneg %p182
        $region34: #{tpu_custom_call.1} parent=11 // pred_check_branch
          %242 = sbr.rel (%p240) target = $region36
        $region35: #{tpu_custom_call.1} parent=11 // pred_region
          _
        $region36: #{tpu_custom_call.1} parent=11 // pred_fallthru
          _
      $region12: #{tpu_custom_call.1} parent=5 // pred_fallthru
        _
      %p243 = scmp.lt.s32.totalorder %s16, 2
      // Predicated region
      $region37: #{tpu_custom_call.1} parent=5 // pred_check
        %p244 = pneg %p243
      $region38: #{tpu_custom_call.1} parent=5 // pred_check_branch
        %246 = sbr.rel (%p244) target = $region40
      $region39: #{tpu_custom_call.1} parent=5 // pred_region
        // Predicated region
        $region41: #{tpu_custom_call.1} parent=39 // pred_check
          %p247 = pneg %p50
        $region42: #{tpu_custom_call.1} parent=39 // pred_check_branch
          %249 = sbr.rel (%p247) target = $region44
        $region43: #{tpu_custom_call.1} parent=39 // pred_region
          %p250 = scmp.lt.s32.totalorder %s23, 1
          %s251 = scalar_select %p250, %s23, 1
          %p252 = scmp.lt.s32.totalorder %s24, 0
          %s253 = scalar_select %p252, %s24, 0
          %s254 = sadd.s32 %s253, %s251
          %s255 = smul.addr %s254, 8
          %s256 = scalar_lea.vmem %s0, %s255
        $region44: #{tpu_custom_call.1} parent=39 // pred_fallthru
          _
      $region40: #{tpu_custom_call.1} parent=5 // pred_fallthru
        _
      %p257 = scmp.le.s32.totalorder 1, %s16
      %p258 = scmp.lt.s32.totalorder %s16, 3
      %p259 = pnand %p257, %p258
      %p260 = pneg %p259
      // Predicated region
      $region45: #{tpu_custom_call.1} parent=5 // pred_check
        _
      $region46: #{tpu_custom_call.1} parent=5 // pred_check_branch
        %262 = sbr.rel (%p259) target = $region48
      $region47: #{tpu_custom_call.1} parent=5 // pred_region
        %s263 = ssub.s32 %s16, 1
        %p264 = scmp.lt.s32.totalorder %s25, 1
        %s265 = scalar_select %p264, %s25, 1
        %p266 = scmp.lt.s32.totalorder %s26, 0
        %s267 = scalar_select %p266, %s26, 0
        %s268 = sadd.s32 %s267, %s265
        %s269 = smul.addr %s268, 8
        %s270 = scalar_lea.vmem %s0, %s269
        %p271 = pneg %p56
        %p272 = pneg %p53
        %p273 = pneg %p77
        %p274 = pneg %p74
        %p275 = pneg %p98
        %p276 = pneg %p95
        %p277 = pneg %p119
        %p278 = pneg %p116
        %p279 = pneg %p140
        %p280 = pneg %p137
        %p281 = pneg %p161
        %p282 = pneg %p158
        %p283 = pneg %p182
        %p284 = pneg %p179
        %p285 = pneg %p210
        %p286 = pneg %p207
        %s287 = sand.u32 %s197, 1
        %s288 = scalar_lea.sflag [#allocation3], %s287
        %s289 = sand.u32 %s197, 1
        %s290 = smul.addr %s289, 8
        %s291 = scalar_lea.vmem [#allocation2], %s290
        %p292 = scmp.lt.s32.totalorder %s25, 1
        %s293 = scalar_select %p292, %s25, 1
        %p294 = scmp.lt.s32.totalorder %s26, 0
        %s295 = scalar_select %p294, %s26, 0
        %s296 = sadd.s32 %s295, %s293
        %s297 = smul.addr %s296, 8
        %s298 = scalar_lea.vmem %s0, %s297
        %v300 = vld [vmem:[%s1] sm:$0xf]
        %v301 = vld [vmem:[%s1 + $0x4] sm:$0xf]
        %v302 = vld [vmem:[%s1 + $0x8] sm:$0xf]
        %v303 = vld [vmem:[%s1 + $0xc] sm:$0xf]
        %v304 = vld [vmem:[%s3] sm:$0xf]
        %v305 = vld [vmem:[%s3 + $0x4] sm:$0xf]
        %v306 = vld [vmem:[%s3 + $0x8] sm:$0xf]
        %v307 = vld [vmem:[%s3 + $0xc] sm:$0xf]
        %v308 = vld [vmem:[%s5] sm:$0xf]
        %v309 = vld [vmem:[%s2] sm:$0xff]
        %v310 = vld [vmem:[%s2 + $0x8] sm:$0xff]
        %v311 = vld [vmem:[%s2 + $0x10] sm:$0xff]
        %v312 = vld [vmem:[%s2 + $0x18] sm:$0xff]
        %v313 = vld [vmem:[%s4] sm:$0xff]
        %v314 = vld [vmem:[%s4 + $0x8] sm:$0xff]
        %v315 = vld [vmem:[%s4 + $0x10] sm:$0xff]
        %v316 = vld [vmem:[%s4 + $0x18] sm:$0xff]
        %v317 = vld [vmem:[%s6] sm:$0xff]
        %v318 = vld [vmem:[%s298] sm:$0xff]
        %v319 = vpack.c.bf16 %v318, %v318
        %321 = vset.pattern.permute.xlu0 0
        %322 = vperm.xlu0 %321, %v309
        %v323 = vpop.permute.xlu0 %322
        %326 = vset.pattern.permute.xlu0 0
        %327 = vperm.xlu0 %326, %v310
        %v328 = vpop.permute.xlu0 %327
        %331 = vset.pattern.permute.xlu0 0
        %332 = vperm.xlu0 %331, %v311
        %v333 = vpop.permute.xlu0 %332
        %336 = vset.pattern.permute.xlu0 0
        %337 = vperm.xlu0 %336, %v312
        %v338 = vpop.permute.xlu0 %337
        %v344 = vunpack.c.l.b16 %v300
        %v345 = vunpack.c.l.b16 %v301
        %v346 = vunpack.c.l.b16 %v302
        %v347 = vunpack.c.l.b16 %v303
        %v348 = vpack.c.b16 %v345, %v344
        %v349 = vpack.c.b16 %v347, %v346
        %vm350 = vcmask 64512
        %v352 = vsel %vm350, %v348, 0
        %v355 = vsel %vm350, %v349, 0
        %vm357 = vcmask 1043456
        %v359 = vsel %vm357, %v319, 0
        %361 = vmatpush.bf16.msra.mxu0 0
        %362 = vmatpush.bf16.msra.mxu0 0
        %363 = vmatpush.bf16.msra.mxu0 0
        %364 = vmatpush.bf16.msra.mxu0 0
        %365 = vmatpush.bf16.msra.mxu0 0
        %366 = vmatpush.bf16.msra.mxu0 0
        %367 = vmatpush.bf16.msra.mxu0 0
        %368 = vmatpush.bf16.msra.mxu0 %v359
        %369 = vmatmul.bf16.gmra.mxu0 %v352
        %v370 = vpop.f32.mrf.mxu0
        %v371 = vadd.f32 %v323, %v370
        %v372 = vpop.f32.mrf.mxu0
        %v373 = vadd.f32 %v328, %v372
        %374 = vmatmul.bf16.gmra.mxu0 %v355
        %v375 = vpop.f32.mrf.mxu0
        %v376 = vadd.f32 %v333, %v375
        %v377 = vpop.f32.mrf.mxu0
        %v378 = vadd.f32 %v338, %v377
        %379 = vdwg.mxu0
        %v380 = vmul.f32 %v371, 0.15
        %v381 = vmul.f32 %v373, 0.15
        %v382 = vmul.f32 %v376, 0.15
        %v383 = vmul.f32 %v378, 0.15
        %v384 = vmax.f32 %v371, %v380
        %v385 = vmax.f32 %v373, %v381
        %v386 = vmax.f32 %v376, %v382
        %v387 = vmax.f32 %v378, %v383
        %v388 = vpack.c.bf16 %v385, %v384
        %v389 = vpack.c.bf16 %v387, %v386
        %391 = vset.pattern.permute.xlu0 0
        %392 = vperm.xlu0 %391, %v313
        %v393 = vpop.permute.xlu0 %392
        %396 = vset.pattern.permute.xlu0 0
        %397 = vperm.xlu0 %396, %v314
        %v398 = vpop.permute.xlu0 %397
        %401 = vset.pattern.permute.xlu0 0
        %402 = vperm.xlu0 %401, %v315
        %v403 = vpop.permute.xlu0 %402
        %406 = vset.pattern.permute.xlu0 0
        %407 = vperm.xlu0 %406, %v316
        %v408 = vpop.permute.xlu0 %407
        %v414 = vunpack.c.l.b16 %v304
        %v415 = vunpack.c.l.b16 %v305
        %v416 = vunpack.c.l.b16 %v306
        %v417 = vunpack.c.l.b16 %v307
        %v418 = vpack.c.b16 %v415, %v414
        %v419 = vpack.c.b16 %v417, %v416
        %vm420 = vcmask 261120
        %v422 = vsel %vm420, %v418, 0
        %v425 = vsel %vm420, %v419, 0
        %427 = vmatpush.bf16.msra.mxu0 0
        %428 = vmatpush.bf16.msra.mxu0 0
        %429 = vmatpush.bf16.msra.mxu0 0
        %430 = vmatpush.bf16.msra.mxu0 0
        %431 = vmatpush.bf16.msra.mxu0 0
        %432 = vmatpush.bf16.msra.mxu0 0
        %433 = vmatpush.bf16.msra.mxu0 %v389
        %434 = vmatpush.bf16.msra.mxu0 %v388
        %435 = vmatmul.bf16.gmra.mxu0 %v422
        %v436 = vpop.f32.mrf.mxu0
        %v437 = vadd.f32 %v393, %v436
        %v438 = vpop.f32.mrf.mxu0
        %v439 = vadd.f32 %v398, %v438
        %440 = vmatmul.bf16.gmra.mxu0 %v425
        %v441 = vpop.f32.mrf.mxu0
        %v442 = vadd.f32 %v403, %v441
        %v443 = vpop.f32.mrf.mxu0
        %v444 = vadd.f32 %v408, %v443
        %445 = vdwg.mxu0
        %v446 = vmul.f32 %v437, 0.15
        %v447 = vmul.f32 %v439, 0.15
        %v448 = vmul.f32 %v442, 0.15
        %v449 = vmul.f32 %v444, 0.15
        %v450 = vmax.f32 %v437, %v446
        %v451 = vmax.f32 %v439, %v447
        %v452 = vmax.f32 %v442, %v448
        %v453 = vmax.f32 %v444, %v449
        %v454 = vpack.c.bf16 %v451, %v450
        %v455 = vpack.c.bf16 %v453, %v452
        %457 = vset.pattern.permute.xlu0 0
        %458 = vperm.xlu0 %457, %v317
        %v459 = vpop.permute.xlu0 %458
        %v462 = vsel %vm420, %v308, 0
        %464 = vmatpush.bf16.msra.mxu0 0
        %465 = vmatpush.bf16.msra.mxu0 0
        %466 = vmatpush.bf16.msra.mxu0 0
        %467 = vmatpush.bf16.msra.mxu0 0
        %468 = vmatpush.bf16.msra.mxu0 0
        %469 = vmatpush.bf16.msra.mxu0 0
        %470 = vmatpush.bf16.msra.mxu0 %v455
        %471 = vmatpush.bf16.msra.mxu0 %v454
        %472 = vmatmul.bf16.gmra.mxu0 %v462
        %v473 = vpop.f32.mrf.mxu0
        %v474 = vadd.f32 %v459, %v473
        %v475 = vpop.f32.mrf.mxu0
        %476 = vdwg.mxu0
        %vm477 = vcmask 523264
        %478 = vst.msk [vmem:[%s291] sm:$0xff] %vm477, %v474
        %s479 = sand.u32 %s197, 1
        %s480 = scalar_lea.sflag [#allocation3], %s479
        %s481 = sand.u32 %s197, 1
        %s482 = smul.addr %s481, 8
        %s483 = scalar_lea.vmem [#allocation2], %s482
        // Predicated region
        $region49: #{tpu_custom_call.1} parent=47 // pred_check
          %p484 = pneg %p207
        $region50: #{tpu_custom_call.1} parent=47 // pred_check_branch
          %486 = sbr.rel (%p484) target = $region52
        $region51: #{tpu_custom_call.1} parent=47 // pred_region
          %488 = vsyncadd %s480, 0
          %s489 = sadd.s32 %s26, %s25
          %s490 = smul.addr %s489, 8
          %s491 = scalar_lea.hbm %s7, %s490
          %s493 = sshll.u32 %s483, 4
          %s494 = int_to_ptr.vmem [resolvable:$true] %s493
          %s495 = sshll.u32 %s491, 4
          %s496 = int_to_ptr.hbm [resolvable:$true] %s495
          %498 = dma.vmem_to_hbm [thread:$0]  %s494, 128, %s496, %s480
        $region52: #{tpu_custom_call.1} parent=47 // pred_fallthru
          _
      $region48: #{tpu_custom_call.1} parent=5 // pred_fallthru
        _
      %p499 = scmp.le.s32.totalorder 2, %s16
      // Predicated region
      $region53: #{tpu_custom_call.1} parent=5 // pred_check
        %p500 = pneg %p499
      $region54: #{tpu_custom_call.1} parent=5 // pred_check_branch
        %502 = sbr.rel (%p500) target = $region56
      $region55: #{tpu_custom_call.1} parent=5 // pred_region
        %s503 = ssub.s32 %s16, 2
        // Predicated region
        $region57: #{tpu_custom_call.1} parent=55 // pred_check
          %p504 = pneg %p213
        $region58: #{tpu_custom_call.1} parent=55 // pred_check_branch
          %506 = sbr.rel (%p504) target = $region60
        $region59: #{tpu_custom_call.1} parent=55 // pred_region
          %s507 = sand.u32 %s198, 1
          %s508 = scalar_lea.sflag [#allocation3], %s507
          %s509 = sand.u32 %s198, 1
          %s510 = smul.addr %s509, 8
          %s511 = scalar_lea.vmem [#allocation2], %s510
          %513 = dma.done %s508, 128
        $region60: #{tpu_custom_call.1} parent=55 // pred_fallthru
          _
      $region56: #{tpu_custom_call.1} parent=5 // pred_fallthru
        _
    $region6: #{tpu_custom_call.1} parent=1 // loop_footer
      %s20 = sadd.s32 1, %s16
    $region7: #{tpu_custom_call.1} parent=1 // loop_footer_branch
      %15 = sbr.rel target = $region3
    $region8: #{tpu_custom_call.1} parent=1 // loop_exit
      _
    %514 = vsyncpa [#allocation3], 1
    %s515 = scalar_lea.sflag [#allocation3], 1
    %516 = vsyncpa %s515, 1

</llo_original>
